<compile_context>
chip_gen: v6e
topology: v6e:2x2x1
jax: 0.10.0
libtpu: 0.0.40
codegen_flags: <defaults>
</compile_context>

<pallas_src>
import jax
import jax.numpy as jnp
from jax.experimental import pallas as pl
from jax.experimental.pallas import tpu as pltpu


def _round_up(n, m):
    return ((n + m - 1) // m) * m


def _mlp_kernel(x_ref, w1_ref, b1_ref, w2t_ref, b2_ref, o_ref):
    # x_ref:   (3, TB)   batch on lanes
    # w1_ref:  (H, 3)    fc1.weight (PyTorch layout)
    # b1_ref:  (H, 1)    fc1.bias as a column
    # w2t_ref: (H, 1)    fc2.weight, pre-transposed to a column
    # b2_ref:  (1, 1)    fc2.bias
    # o_ref:   (1, TB)   lane-dense output
    x = x_ref[...]        # (3, TB)
    w1 = w1_ref[...]      # (H, 3)
    b1 = b1_ref[...]      # (H, 1)
    w2t = w2t_ref[...]    # (H, 1)
    b2 = b2_ref[...]      # (1, 1)

    k_in = x_ref.shape[0]  # static = 3

    # fc1 as broadcast FMAs on the VPU: (H,1)*(1,TB) -> (H,TB), accumulate over K=3.
    h = b1 + w1[:, 0:1] * x[0:1, :]
    for k in range(1, k_in):
        h = h + w1[:, k:k + 1] * x[k:k + 1, :]

    # ReLU on the VPU.
    h = jnp.maximum(h, 0.0)

    # fc2 as a weighted sublane reduce (XLU): sum_j w2[j] * h[j, :] + b2.
    o_ref[...] = jnp.sum(w2t * h, axis=0, keepdims=True) + b2


def mlp_forward(x, fc1_w, fc1_b, fc2_w, fc2_b, *, tb=131072):
    """Forward pass of the MLP.

    x:     (B, 3)  float32  (PyTorch nn.Linear input layout)
    fc1_w: (H, 3)  fc1.weight
    fc1_b: (H,)    fc1.bias
    fc2_w: (1, H)  fc2.weight
    fc2_b: (1,)    fc2.bias
    returns (B, 1) float32
    """
    B = x.shape[0]
    H = fc1_w.shape[0]

    # Batch tile on the lane axis:
    #  - multiple of 128 lanes,
    #  - target >= 4 grid steps (2 per TensorCore on v7x) when B is large enough,
    #  - capped at `tb` (~128K lanes => ~20 MiB VMEM footprint, safe on v7x too).
    tb_eff = max(128, min(tb, _round_up(pl.cdiv(B, 4), 128)))
    b_pad = _round_up(B, tb_eff)
    grid = (b_pad // tb_eff,)

    # Single fused transpose + tail-only pad (no full zero-fill + scatter).
    x_t = jnp.pad(x.astype(jnp.float32).T, ((0, 0), (0, b_pad - B)))

    w1 = fc1_w.astype(jnp.float32)                     # (H, 3)
    b1 = fc1_b.reshape(H, 1).astype(jnp.float32)       # (H, 1)
    w2t = fc2_w.reshape(1, H).T.astype(jnp.float32)    # (H, 1)  pre-transposed
    b2 = fc2_b.reshape(1, 1).astype(jnp.float32)       # (1, 1)

    out_t = pl.pallas_call(
        _mlp_kernel,
        out_shape=jax.ShapeDtypeStruct((1, b_pad), jnp.float32),
        grid=grid,
        in_specs=[
            pl.BlockSpec((3, tb_eff), lambda i: (0, i)),   # x: streamed per tile
            pl.BlockSpec((H, 3), lambda i: (0, 0)),        # w1: resident
            pl.BlockSpec((H, 1), lambda i: (0, 0)),        # b1: resident
            pl.BlockSpec((H, 1), lambda i: (0, 0)),        # w2^T: resident
            pl.BlockSpec((1, 1), lambda i: (0, 0)),        # b2: resident
        ],
        out_specs=pl.BlockSpec((1, tb_eff), lambda i: (0, i)),  # lane-dense output
        compiler_params=pltpu.CompilerParams(
            dimension_semantics=("parallel",),
            vmem_limit_bytes=48 * 1024 * 1024,
        ),
    )(x_t, w1, b1, w2t, b2)

    # Slice off batch padding and return in PyTorch's (B, 1) layout.
    return out_t[:, :B].T


def init_params(key, num_hidden_neurons=8):
    # Deterministic init matching nn.Linear shapes:
    #   fc1.weight (H, 3), fc1.bias (H,), fc2.weight (1, H), fc2.bias (1,)
    k1, k2, k3, k4 = jax.random.split(key, 4)
    in1, out1 = 3, num_hidden_neurons
    in2, out2 = num_hidden_neurons, 1
    lim1 = 1.0 / jnp.sqrt(in1)
    lim2 = 1.0 / jnp.sqrt(in2)
    fc1_w = jax.random.uniform(k1, (out1, in1), jnp.float32, -lim1, lim1)
    fc1_b = jax.random.uniform(k2, (out1,), jnp.float32, -lim1, lim1)
    fc2_w = jax.random.uniform(k3, (out2, in2), jnp.float32, -lim2, lim2)
    fc2_b = jax.random.uniform(k4, (out2,), jnp.float32, -lim2, lim2)
    return fc1_w, fc1_b, fc2_w, fc2_b


if __name__ == "__main__":
    key = jax.random.PRNGKey(0)
    kx, kp = jax.random.split(key)

    batch = 8
    num_hidden_neurons = 8
    # Mimic MinMaxScaler(feature_range=(0.1, 0.9)) output range for inputs.
    x = jax.random.uniform(kx, (batch, 3), jnp.float32, 0.1, 0.9)

    fc1_w, fc1_b, fc2_w, fc2_b = init_params(kp, num_hidden_neurons)

    out = mlp_forward(x, fc1_w, fc1_b, fc2_w, fc2_b)
    out = jax.block_until_ready(out)

    # Reference check in plain JAX (same math as the PyTorch forward).
    ref = jnp.maximum(x @ fc1_w.T + fc1_b, 0.0) @ fc2_w.T + fc2_b
    assert out.shape == (batch, 1)
    assert jnp.allclose(out, ref, atol=1e-5, rtol=1e-5)

    # Larger-batch check to exercise multi-step grid / padding path.
    kx2, _ = jax.random.split(kx)
    xb = jax.random.uniform(kx2, (1000, 3), jnp.float32, 0.1, 0.9)
    outb = jax.block_until_ready(mlp_forward(xb, fc1_w, fc1_b, fc2_w, fc2_b))
    refb = jnp.maximum(xb @ fc1_w.T + fc1_b, 0.0) @ fc2_w.T + fc2_b
    assert outb.shape == (1000, 1)
    assert jnp.allclose(outb, refb, atol=1e-5, rtol=1e-5)

    print("KERNEL_OK")
</pallas_src>

<mosaic_0001>
module attributes {stable_mosaic.version = 11 : i64} {
  func.func @_mlp_kernel(%arg0: i32, %arg1: memref<3x128xf32, #tpu.memory_space<vmem>>, %arg2: memref<8x3xf32, #tpu.memory_space<vmem>>, %arg3: memref<8x1xf32, #tpu.memory_space<vmem>>, %arg4: memref<8x1xf32, #tpu.memory_space<vmem>>, %arg5: memref<1x1xf32, #tpu.memory_space<vmem>>, %arg6: memref<1x128xf32, #tpu.memory_space<vmem>>) attributes {dimension_semantics = [#tpu.dimension_semantics<parallel>], iteration_bounds = array<i64: 1>, scalar_prefetch = 0 : i64, scratch_operands = 0 : i64, tpu.core_type = #tpu.core_type<tc>, window_params = [{transform_indices = @transform_0, window_bounds = array<i64: 3, 128>}, {pipeline_mode = #tpu.pipeline_mode<synchronous>, transform_indices = @transform_1, window_bounds = array<i64: 8, 3>}, {pipeline_mode = #tpu.pipeline_mode<synchronous>, transform_indices = @transform_2, window_bounds = array<i64: 8, 1>}, {pipeline_mode = #tpu.pipeline_mode<synchronous>, transform_indices = @transform_3, window_bounds = array<i64: 8, 1>}, {pipeline_mode = #tpu.pipeline_mode<synchronous>, transform_indices = @transform_4, window_bounds = array<i64: 1, 1>}, {transform_indices = @transform_5, window_bounds = array<i64: 1, 128>}]} {
    %c0 = arith.constant 0 : index
    %c0_0 = arith.constant 0 : index
    %0 = vector.load %arg1[%c0, %c0_0] : memref<3x128xf32, #tpu.memory_space<vmem>>, vector<3x128xf32>
    %c0_1 = arith.constant 0 : index
    %c0_2 = arith.constant 0 : index
    %1 = vector.load %arg2[%c0_1, %c0_2] : memref<8x3xf32, #tpu.memory_space<vmem>>, vector<8x3xf32>
    %c0_3 = arith.constant 0 : index
    %c0_4 = arith.constant 0 : index
    %2 = vector.load %arg3[%c0_3, %c0_4] : memref<8x1xf32, #tpu.memory_space<vmem>>, vector<8x1xf32>
    %c0_5 = arith.constant 0 : index
    %c0_6 = arith.constant 0 : index
    %3 = vector.load %arg4[%c0_5, %c0_6] : memref<8x1xf32, #tpu.memory_space<vmem>>, vector<8x1xf32>
    %c0_7 = arith.constant 0 : index
    %c0_8 = arith.constant 0 : index
    %4 = vector.load %arg5[%c0_7, %c0_8] : memref<1x1xf32, #tpu.memory_space<vmem>>, vector<1x1xf32>
    %5 = vector.extract_strided_slice %1 {offsets = [0, 0], sizes = [8, 1], strides = [1, 1]} : vector<8x3xf32> to vector<8x1xf32>
    %6 = vector.extract_strided_slice %0 {offsets = [0, 0], sizes = [1, 128], strides = [1, 1]} : vector<3x128xf32> to vector<1x128xf32>
    %7 = vector.broadcast %5 : vector<8x1xf32> to vector<8x128xf32>
    %8 = vector.broadcast %6 : vector<1x128xf32> to vector<8x128xf32>
    %9 = arith.mulf %7, %8 : vector<8x128xf32>
    %10 = vector.broadcast %2 : vector<8x1xf32> to vector<8x128xf32>
    %11 = arith.addf %10, %9 : vector<8x128xf32>
    %12 = vector.extract_strided_slice %1 {offsets = [0, 1], sizes = [8, 1], strides = [1, 1]} : vector<8x3xf32> to vector<8x1xf32>
    %13 = vector.extract_strided_slice %0 {offsets = [1, 0], sizes = [1, 128], strides = [1, 1]} : vector<3x128xf32> to vector<1x128xf32>
    %14 = vector.broadcast %12 : vector<8x1xf32> to vector<8x128xf32>
    %15 = vector.broadcast %13 : vector<1x128xf32> to vector<8x128xf32>
    %16 = arith.mulf %14, %15 : vector<8x128xf32>
    %17 = arith.addf %11, %16 : vector<8x128xf32>
    %18 = vector.extract_strided_slice %1 {offsets = [0, 2], sizes = [8, 1], strides = [1, 1]} : vector<8x3xf32> to vector<8x1xf32>
    %19 = vector.extract_strided_slice %0 {offsets = [2, 0], sizes = [1, 128], strides = [1, 1]} : vector<3x128xf32> to vector<1x128xf32>
    %20 = vector.broadcast %18 : vector<8x1xf32> to vector<8x128xf32>
    %21 = vector.broadcast %19 : vector<1x128xf32> to vector<8x128xf32>
    %22 = arith.mulf %20, %21 : vector<8x128xf32>
    %23 = arith.addf %17, %22 : vector<8x128xf32>
    %cst = arith.constant 0.000000e+00 : f32
    %24 = vector.broadcast %cst : f32 to vector<8x128xf32>
    %25 = arith.maximumf %23, %24 : vector<8x128xf32>
    %26 = vector.broadcast %3 : vector<8x1xf32> to vector<8x128xf32>
    %27 = arith.mulf %26, %25 : vector<8x128xf32>
    %cst_9 = arith.constant dense<0.000000e+00> : vector<128xf32>
    %28 = vector.multi_reduction <add>, %27, %cst_9 [0] : vector<8x128xf32> to vector<128xf32>
    %29 = vector.shape_cast %28 : vector<128xf32> to vector<1x128xf32>
    %30 = vector.broadcast %4 : vector<1x1xf32> to vector<1x128xf32>
    %31 = arith.addf %29, %30 : vector<1x128xf32>
    %c0_10 = arith.constant 0 : index
    %c0_11 = arith.constant 0 : index
    %32 = vector.load %arg6[%c0_10, %c0_11] : memref<1x128xf32, #tpu.memory_space<vmem>>, vector<1x128xf32>
    tpu.vector_store %arg6[%c0_10, %c0_11], %31 {strides = array<i32>} : memref<1x128xf32, #tpu.memory_space<vmem>>, vector<1x128xf32>,
    return
  }
  func.func @transform_0(%arg0: i32) -> (i32, i32) {
    %c0_i32 = arith.constant 0 : i32
    %c0_i32_0 = arith.constant 0 : i32
    return %c0_i32, %arg0 : i32, i32
  }
  func.func @transform_1(%arg0: i32) -> (i32, i32) {
    %c0_i32 = arith.constant 0 : i32
    %c0_i32_0 = arith.constant 0 : i32
    %c0_i32_1 = arith.constant 0 : i32
    return %c0_i32, %c0_i32_0 : i32, i32
  }
  func.func @transform_2(%arg0: i32) -> (i32, i32) {
    %c0_i32 = arith.constant 0 : i32
    %c0_i32_0 = arith.constant 0 : i32
    %c0_i32_1 = arith.constant 0 : i32
    return %c0_i32, %c0_i32_0 : i32, i32
  }
  func.func @transform_3(%arg0: i32) -> (i32, i32) {
    %c0_i32 = arith.constant 0 : i32
    %c0_i32_0 = arith.constant 0 : i32
    %c0_i32_1 = arith.constant 0 : i32
    return %c0_i32, %c0_i32_0 : i32, i32
  }
  func.func @transform_4(%arg0: i32) -> (i32, i32) {
    %c0_i32 = arith.constant 0 : i32
    %c0_i32_0 = arith.constant 0 : i32
    %c0_i32_1 = arith.constant 0 : i32
    return %c0_i32, %c0_i32_0 : i32, i32
  }
  func.func @transform_5(%arg0: i32) -> (i32, i32) {
    %c0_i32 = arith.constant 0 : i32
    %c0_i32_0 = arith.constant 0 : i32
    return %c0_i32, %arg0 : i32, i32
  }
}

</mosaic_0001>

<llo_original>
// kernel: tpu_custom_call.1
$region0: #{tpu_custom_call.1}
  #allocation0 [shape = 'u32[]', space=smem, size = 0x4, offset = 0x4, fixed_abs, tag = 'smem constant byte address 0x4 - core index']
  #allocation1 [shape = 'u32[144,128]{1,0:T(1,128)}', space=vmem, size = 0x12000, scoped, tag = 'internal scratch']
  #allocation2 [shape = 'f32[1,1]{1,0:T(1,128)S(1)}', space=vmem, size = 0x200, scoped, tag = 'scoped memory for tpu_custom_call.1']
  %s0 = inlined_call_operand.vmem [shape: f32[3,128], index: 0, kind: input, shape index: {}]
  %s1 = inlined_call_operand.vmem [shape: f32[8,3], index: 1, kind: input, shape index: {}]
  %s2 = inlined_call_operand.vmem [shape: f32[8,1], index: 2, kind: input, shape index: {}]
  %s3 = inlined_call_operand.vmem [shape: f32[8,1], index: 3, kind: input, shape index: {}]
  %s4 = inlined_call_operand.<no memory space> [shape: f32[1,1], index: 4, kind: input, shape index: {}]
  %s5 = inlined_call_operand.hbm [shape: f32[1,128], index: 5, kind: output, shape index: {}]
  %s6 = sld [smem:[#allocation0]]
  $region30: #{tpu_custom_call.1} parent=0
    _
  %s8 = ssub.s32 1, %s6
  %s9 = scalar_select 0, %s8, %s6
  %v10 = vstv %s4
  %11 = vst [vmem:[#allocation2] sm:$0x1] %v10
  $region1: #{tpu_custom_call.1} parent=0
    #allocation3 [shape = 'u8[512]{0}', space=vmem, size = 0x400, scoped, tag = 'output window, operand 0, single buffered']
    #allocation4 [shape = 's32[1]{0}', space=sflag, size = 0x4, scoped, tag = 'scoped memory for tpu_custom_call.1']
    %12 = vsyncpa [#allocation4], 0
    // Predicated region
    $region2: #{tpu_custom_call.1} parent=1 // pred_check
      _
    $region3: #{tpu_custom_call.1} parent=1 // pred_check_branch
      %14 = sbr.rel (0) target = $region5
    $region4: #{tpu_custom_call.1} parent=1 // pred_region
      _
    $region5: #{tpu_custom_call.1} parent=1 // pred_fallthru
      _
    // Predicated region
    $region6: #{tpu_custom_call.1} parent=1 // pred_check
      _
    $region7: #{tpu_custom_call.1} parent=1 // pred_check_branch
      %16 = sbr.rel (0) target = $region9
    $region8: #{tpu_custom_call.1} parent=1 // pred_region
      _
    $region9: #{tpu_custom_call.1} parent=1 // pred_fallthru
      _
    // Predicated region
    $region10: #{tpu_custom_call.1} parent=1 // pred_check
      _
    $region11: #{tpu_custom_call.1} parent=1 // pred_check_branch
      %18 = sbr.rel (0) target = $region13
    $region12: #{tpu_custom_call.1} parent=1 // pred_region
      _
    $region13: #{tpu_custom_call.1} parent=1 // pred_fallthru
      _
    // Predicated region
    $region14: #{tpu_custom_call.1} parent=1 // pred_check
      _
    $region15: #{tpu_custom_call.1} parent=1 // pred_check_branch
      %20 = sbr.rel (0) target = $region17
    $region16: #{tpu_custom_call.1} parent=1 // pred_region
      _
    $region17: #{tpu_custom_call.1} parent=1 // pred_fallthru
      _
    // Predicated region
    $region18: #{tpu_custom_call.1} parent=1 // pred_check
      _
    $region19: #{tpu_custom_call.1} parent=1 // pred_check_branch
      %22 = sbr.rel (0) target = $region21
    $region20: #{tpu_custom_call.1} parent=1 // pred_region
      _
    $region21: #{tpu_custom_call.1} parent=1 // pred_fallthru
      _
    %v23 = vld [vmem:[%s0] sm:$0x7]
    %v24 = vld [vmem:[%s1] sm:$0xff]
    %v25 = vld [vmem:[%s2] sm:$0xff]
    %v26 = vld [vmem:[%s3] sm:$0xff]
    %v27 = vld [vmem:[#allocation2] sm:$0x1]
    %29 = vset.pattern.permute.xlu0 0
    %30 = vperm.xlu0 %29, %v24
    %v31 = vpop.permute.xlu0 %30
    %v33 = vlaneseq
    %v34 = vshrl.u32 %v33, 7
    %v35 = vsub.s32 0, %v34
    %v36 = vrot.slane %v23, %v35
    %v37 = vmul.f32 %v31, %v36
    %39 = vset.pattern.permute.xlu0 0
    %40 = vperm.xlu0 %39, %v25
    %v41 = vpop.permute.xlu0 %40
    %v43 = vadd.f32 %v41, %v37
    %44 = vset.pattern.permute.xlu0 1
    %45 = vperm.xlu0 %44, %v24
    %v46 = vpop.permute.xlu0 %45
    %v48 = vlaneseq
    %v49 = vshrl.u32 %v48, 7
    %v50 = vsub.s32 1, %v49
    %v51 = vrot.slane %v23, %v50
    %v52 = vmul.f32 %v46, %v51
    %v53 = vadd.f32 %v43, %v52
    %54 = vset.pattern.permute.xlu0 2
    %55 = vperm.xlu0 %54, %v24
    %v56 = vpop.permute.xlu0 %55
    %v58 = vlaneseq
    %v59 = vshrl.u32 %v58, 7
    %v60 = vsub.s32 2, %v59
    %v61 = vrot.slane %v23, %v60
    %v62 = vmul.f32 %v56, %v61
    %v63 = vadd.f32 %v53, %v62
    %v64 = vmax.f32 %v63, 0.0
    %66 = vset.pattern.permute.xlu0 0
    %67 = vperm.xlu0 %66, %v26
    %v68 = vpop.permute.xlu0 %67
    %v70 = vmul.f32 %v68, %v64
    %v71 = vrot.slane %v70, 4
    %v72 = vadd.f32 %v70, %v71
    %v73 = vrot.slane %v72, 2
    %v74 = vadd.f32 %v72, %v73
    %v75 = vrot.slane %v74, 1
    %v76 = vadd.f32 %v74, %v75
    %78 = vset.pattern.permute.xlu0 0
    %79 = vperm.xlu0 %78, %v27
    %v80 = vpop.permute.xlu0 %79
    %v82 = vlaneseq
    %v83 = vshrl.u32 %v82, 7
    %v84 = vsub.s32 0, %v83
    %v85 = vrot.slane %v80, %v84
    %v86 = vadd.f32 %v76, %v85
    %87 = vst [vmem:[#allocation3] sm:$0x1] %v86
    // Predicated region
    $region22: #{tpu_custom_call.1} parent=1 // pred_check
      _
    $region23: #{tpu_custom_call.1} parent=1 // pred_check_branch
      %89 = sbr.rel (0) target = $region25
    $region24: #{tpu_custom_call.1} parent=1 // pred_region
      %s91 = ssub.s32 16, 16
      %92 = vsyncadd [#allocation4], %s91
      %s94 = sshll.u32 [#allocation3], 4
      %s95 = int_to_ptr.vmem [resolvable:$true] %s94
      %97 = dma.vmem_to_hbm [thread:$0]  %s95, 16, %s5, [#allocation4]
    $region25: #{tpu_custom_call.1} parent=1 // pred_fallthru
      _
    // Predicated region
    $region26: #{tpu_custom_call.1} parent=1 // pred_check
      _
    $region27: #{tpu_custom_call.1} parent=1 // pred_check_branch
      %99 = sbr.rel (0) target = $region29
    $region28: #{tpu_custom_call.1} parent=1 // pred_region
      %100 = dma.done [#allocation4], 16
    $region29: #{tpu_custom_call.1} parent=1 // pred_fallthru
      _
    %101 = vsyncpa [#allocation4], 1

</llo_original>
